<compile_context>
chip_gen: v7x
topology: tpu7x:2x2x1
jax: 0.10.0
libtpu: 0.0.40
codegen_flags: <defaults>
</compile_context>

<pallas_src>
import jax
import jax.numpy as jnp
from jax.experimental import pallas as pl
from jax.experimental.pallas import tpu as pltpu


def _round_up(x, m):
    return ((x + m - 1) // m) * m


def _cdiv(a, b):
    return (a + b - 1) // b


def _tpu_vmem_bytes():
    """Physical per-core VMEM (best effort); conservative fallback (v7x-sized)."""
    try:
        info = pltpu.get_tpu_info()
        vmem = int(getattr(info, "vmem_capacity_bytes", 0))
        if vmem > 0:
            return vmem
    except Exception:
        pass
    return 64 << 20


def _choose_batch_tile(batch, bytes_per_row, budget_bytes):
    """Largest multiple-of-8 batch tile whose per-step footprint fits the budget.

    Never returns an unbudgeted full-batch block; the wrapper pads the batch up
    to a multiple of the tile. When the whole batch would fit in one block and
    the batch is big enough, split into >=2 grid steps so the 'parallel' axis
    has work to shard across v7x's two TensorCores.
    """
    b8 = _round_up(batch, 8)
    max_rows = max(8, (budget_bytes // max(bytes_per_row, 1)) // 8 * 8)
    tb = min(b8, max_rows)
    if tb >= b8 and b8 >= 16:
        tb = _round_up(_cdiv(b8, 2), 8)
    return tb


def _attention_core(h, k, vals, w_fused, b_fused, w_bias, c_bias, wc_ref, attn_ref):
    tb, seq_len = k.shape[0], k.shape[1]

    # tproj = linear_in_h(h) @ Wv, pre-fused into a single MXU matmul.
    tproj = jnp.dot(h, w_fused, preferred_element_type=jnp.float32) + b_fused   # [TB, v_dim]
    # bias_term = linear_in_h(h) . b_v, pre-folded onto h (tiny lane reduce).
    bias_term = jnp.sum(h * w_bias, axis=-1, keepdims=True) + c_bias            # [TB, 1]

    # Raw attention logits: VPU multiply + lane reduce (no per-batch bmm).
    logits = jnp.sum(k * tproj[:, None, :], axis=-1) + bias_term                # [TB, S]

    # The module returns the PRE-softmax logits. Pad to the lane-dense slab
    # in-register and issue ONE dense (unmasked) store.
    s_pad = attn_ref.shape[-1]
    out_logits = logits.astype(attn_ref.dtype)
    if s_pad != seq_len:
        out_logits = jnp.concatenate(
            [out_logits, jnp.zeros((tb, s_pad - seq_len), attn_ref.dtype)], axis=-1)
    attn_ref[...] = out_logits

    # Softmax over the sequence axis; exact division ([TB,1] denominators, cheap).
    m = jnp.max(logits, axis=-1, keepdims=True)
    e = jnp.exp(logits - m)
    attn_sm = e / jnp.sum(e, axis=-1, keepdims=True)

    # weighted_context = sum_s attn_sm[b,s] * vals[b,s,:]  (VPU mul + sublane
    # reduce; avoids TB degenerate M=1 MXU matmuls and attn relayouts).
    wc = jnp.sum(attn_sm[:, :, None] * vals, axis=1)                            # [TB, val_dim]
    wc_ref[...] = wc.astype(wc_ref.dtype)


def _kernel_shared_values(h_ref, k_ref, wf_ref, bf_ref, wb_ref, c_ref,
                          wc_ref, attn_ref):
    # v is None in the PyTorch call -> values tensor is k itself (no extra DMA).
    k = k_ref[...].astype(jnp.float32)
    _attention_core(h_ref[...].astype(jnp.float32), k, k,
                    wf_ref[...], bf_ref[...], wb_ref[...], c_ref[...],
                    wc_ref, attn_ref)


def _kernel_separate_values(h_ref, k_ref, v_ref, wf_ref, bf_ref, wb_ref, c_ref,
                            wc_ref, attn_ref):
    _attention_core(h_ref[...].astype(jnp.float32),
                    k_ref[...].astype(jnp.float32),
                    v_ref[...].astype(jnp.float32),
                    wf_ref[...], bf_ref[...], wb_ref[...], c_ref[...],
                    wc_ref, attn_ref)


def prepare_visual_attention_params(w_in_h, b_in_h, w_in_v, b_in_v):
    """One-time fusion of the two nn.Linear layers (PyTorch weights are [out, in]).

      target = h @ Wh^T + b_h
      logits = (k @ Wv^T + b_v) . target
             = k . (h @ (Wh^T Wv) + b_h Wv)  +  h . (Wh^T b_v)  +  b_h . b_v

    Only the fused matrices ever reach the kernel: one MXU matmul per step
    instead of two dependent ones, and the b_v term collapses to a per-row dot.
    """
    w_h = jnp.asarray(w_in_h, jnp.float32)            # [dot, h_dim]
    w_v = jnp.asarray(w_in_v, jnp.float32)            # [dot, v_dim]
    b_h = jnp.asarray(b_in_h, jnp.float32)            # [dot]
    b_v = jnp.asarray(b_in_v, jnp.float32)            # [dot]
    return {
        "w_fused": w_h.T @ w_v,                       # [h_dim, v_dim]
        "b_fused": (b_h @ w_v).reshape(1, -1),        # [1, v_dim]
        "w_bias": (w_h.T @ b_v).reshape(1, -1),       # [1, h_dim]
        "c_bias": jnp.dot(b_h, b_v).reshape(1, 1),    # [1, 1]
    }


def visual_soft_dot_attention(params, h, k, mask=None, v=None):
    """h: [B, h_dim], k: [B, S, v_dim], optional v: [B, S, val_dim].

    Returns (weighted_context [B, val_dim], attn_logits [B, S]).
    `mask` is accepted for API parity but — exactly like the PyTorch forward —
    it is not used.
    """
    del mask  # unused by the original module's forward
    B, S, v_dim = k.shape
    h_dim = h.shape[-1]
    values = k if v is None else v
    val_dim = values.shape[-1]
    s_pad = _round_up(S, 128)                          # lane-dense attn slab

    # Generation-aware VMEM budgeting (v7x: 64 MiB/TC, v5e/v6e: 128 MiB).
    vmem = _tpu_vmem_bytes()
    budget = max(8 << 20, min(40 << 20, vmem // 4))

    # Per-batch-row footprint of one grid step (f32):
    #  - streamed blocks (double-buffered): h row, k row, optional v row,
    #    wc row, attn slab row
    #  - elementwise temporaries: k*tproj and attn_sm*vals (each [S, dim]).
    stream_elems = h_dim + S * v_dim + val_dim + s_pad
    if v is not None:
        stream_elems += S * val_dim
    temp_elems = S * v_dim + S * val_dim
    bytes_per_row = 4 * (2 * stream_elems + temp_elems)

    tb = _choose_batch_tile(B, bytes_per_row, budget)
    b_pad = _cdiv(B, tb) * tb
    grid = (b_pad // tb,)

    # Explicit VMEM limit with headroom (never rely on the scoped default).
    weights_bytes = 4 * (h_dim * v_dim + v_dim + h_dim + 1)
    need = tb * bytes_per_row + 2 * weights_bytes + (8 << 20)
    vmem_limit = int(min(vmem * 3 // 4, max(need, 48 << 20)))
    vmem_limit = max(vmem_limit, 32 << 20)

    # Pad the batch (instead of an unbudgeted full-batch fallback block).
    if b_pad != B:
        pad_rows = b_pad - B
        h = jnp.pad(h, ((0, pad_rows), (0, 0)))
        k = jnp.pad(k, ((0, pad_rows), (0, 0), (0, 0)))
        if v is not None:
            v = jnp.pad(v, ((0, pad_rows), (0, 0), (0, 0)))

    h_spec = pl.BlockSpec((tb, h_dim), lambda b: (b, 0))
    k_spec = pl.BlockSpec((tb, S, v_dim), lambda b: (b, 0, 0))
    # Fused weights/biases: same block every step -> VMEM-resident, no re-DMA.
    wf_spec = pl.BlockSpec((h_dim, v_dim), lambda b: (0, 0))
    bf_spec = pl.BlockSpec((1, v_dim), lambda b: (0, 0))
    wb_spec = pl.BlockSpec((1, h_dim), lambda b: (0, 0))
    c_spec = pl.BlockSpec((1, 1), lambda b: (0, 0))

    out_shapes = (jax.ShapeDtypeStruct((b_pad, val_dim), jnp.float32),
                  jax.ShapeDtypeStruct((b_pad, s_pad), jnp.float32))
    out_specs = (pl.BlockSpec((tb, val_dim), lambda b: (b, 0)),
                 pl.BlockSpec((tb, s_pad), lambda b: (b, 0)))

    if v is None:
        kernel = _kernel_shared_values
        in_specs = [h_spec, k_spec, wf_spec, bf_spec, wb_spec, c_spec]
        operands = (h, k, params["w_fused"], params["b_fused"],
                    params["w_bias"], params["c_bias"])
    else:
        kernel = _kernel_separate_values
        v_spec = pl.BlockSpec((tb, S, val_dim), lambda b: (b, 0, 0))
        in_specs = [h_spec, k_spec, v_spec, wf_spec, bf_spec, wb_spec, c_spec]
        operands = (h, k, v, params["w_fused"], params["b_fused"],
                    params["w_bias"], params["c_bias"])

    wc, attn_padded = pl.pallas_call(
        kernel,
        out_shape=out_shapes,
        grid=grid,
        in_specs=in_specs,
        out_specs=out_specs,
        compiler_params=pltpu.CompilerParams(
            dimension_semantics=("parallel",),    # megacore batch sharding (v7x)
            vmem_limit_bytes=vmem_limit),
    )(*operands)
    return wc[:B], attn_padded[:B, :S]


def _reference(h, k, w_h, b_h, w_v, b_v, v=None):
    target = h @ w_h.T + b_h                                     # [B, dot]
    context = jnp.einsum('bsv,dv->bsd', k, w_v) + b_v            # [B, S, dot]
    attn = jnp.einsum('bsd,bd->bs', context, target)             # [B, S] raw logits
    attn_sm = jax.nn.softmax(attn, axis=1)
    values = k if v is None else v
    wc = jnp.einsum('bs,bsv->bv', attn_sm, values)
    return wc, attn


if __name__ == "__main__":
    # Full-f32 matmuls in the reference / param-fusion path.
    jax.config.update("jax_default_matmul_precision", "highest")

    B, S = 2, 8
    h_dim, v_dim, dot_dim = 32, 32, 64

    key = jax.random.PRNGKey(0)
    ks = jax.random.split(key, 7)
    h = jax.random.normal(ks[0], (B, h_dim), jnp.float32)
    k = jax.random.normal(ks[1], (B, S, v_dim), jnp.float32)
    v = jax.random.normal(ks[2], (B, S, v_dim), jnp.float32)

    # PyTorch nn.Linear convention: weight is [out_features, in_features], bias [out].
    bh_bound = 1.0 / (h_dim ** 0.5)
    bv_bound = 1.0 / (v_dim ** 0.5)
    w_h = jax.random.uniform(ks[3], (dot_dim, h_dim), jnp.float32, -bh_bound, bh_bound)
    b_h = jax.random.uniform(ks[4], (dot_dim,), jnp.float32, -bh_bound, bh_bound)
    w_v = jax.random.uniform(ks[5], (dot_dim, v_dim), jnp.float32, -bv_bound, bv_bound)
    b_v = jax.random.uniform(ks[6], (dot_dim,), jnp.float32, -bv_bound, bv_bound)

    params = prepare_visual_attention_params(w_h, b_h, w_v, b_v)

    # Path 1: v=None (values == k), the usual call in the R2R-pano models.
    wc, attn = visual_soft_dot_attention(params, h, k)
    jax.block_until_ready((wc, attn))
    ref_wc, ref_attn = _reference(h, k, w_h, b_h, w_v, b_v)
    assert wc.shape == (B, v_dim) and attn.shape == (B, S)
    assert jnp.allclose(attn, ref_attn, atol=1e-4, rtol=1e-4), "attn logits mismatch"
    assert jnp.allclose(wc, ref_wc, atol=2e-4, rtol=2e-4), "weighted_context mismatch"

    # Path 2: explicit value tensor v.
    wc_v, attn_v = visual_soft_dot_attention(params, h, k, v=v)
    jax.block_until_ready((wc_v, attn_v))
    ref_wc_v, ref_attn_v = _reference(h, k, w_h, b_h, w_v, b_v, v=v)
    assert jnp.allclose(attn_v, ref_attn_v, atol=1e-4, rtol=1e-4), "attn mismatch (v)"
    assert jnp.allclose(wc_v, ref_wc_v, atol=2e-4, rtol=2e-4), "weighted_context mismatch (v)"

    print("KERNEL_OK")
</pallas_src>

<mosaic_0001>
module attributes {stable_mosaic.version = 11 : i64} {
  func.func @_kernel_shared_values(%arg0: i32, %arg1: memref<8x32xf32, #tpu.memory_space<vmem>>, %arg2: memref<8x8x32xf32, #tpu.memory_space<vmem>>, %arg3: memref<32x32xf32, #tpu.memory_space<vmem>>, %arg4: memref<1x32xf32, #tpu.memory_space<vmem>>, %arg5: memref<1x32xf32, #tpu.memory_space<vmem>>, %arg6: memref<1x1xf32, #tpu.memory_space<vmem>>, %arg7: memref<8x32xf32, #tpu.memory_space<vmem>>, %arg8: memref<8x128xf32, #tpu.memory_space<vmem>>) attributes {dimension_semantics = [#tpu.dimension_semantics<parallel>], iteration_bounds = array<i64: 1>, scalar_prefetch = 0 : i64, scratch_operands = 0 : i64, tpu.core_type = #tpu.core_type<tc>, window_params = [{transform_indices = @transform_0, window_bounds = array<i64: 8, 32>}, {transform_indices = @transform_1, window_bounds = array<i64: 8, 8, 32>}, {pipeline_mode = #tpu.pipeline_mode<synchronous>, transform_indices = @transform_2, window_bounds = array<i64: 32, 32>}, {pipeline_mode = #tpu.pipeline_mode<synchronous>, transform_indices = @transform_3, window_bounds = array<i64: 1, 32>}, {pipeline_mode = #tpu.pipeline_mode<synchronous>, transform_indices = @transform_4, window_bounds = array<i64: 1, 32>}, {pipeline_mode = #tpu.pipeline_mode<synchronous>, transform_indices = @transform_5, window_bounds = array<i64: 1, 1>}, {transform_indices = @transform_6, window_bounds = array<i64: 8, 32>}, {transform_indices = @transform_7, window_bounds = array<i64: 8, 128>}]} {
    %c0 = arith.constant 0 : index
    %c0_0 = arith.constant 0 : index
    %c0_1 = arith.constant 0 : index
    %0 = vector.load %arg2[%c0, %c0_0, %c0_1] : memref<8x8x32xf32, #tpu.memory_space<vmem>>, vector<8x8x32xf32>
    %c0_2 = arith.constant 0 : index
    %c0_3 = arith.constant 0 : index
    %1 = vector.load %arg1[%c0_2, %c0_3] : memref<8x32xf32, #tpu.memory_space<vmem>>, vector<8x32xf32>
    %c0_4 = arith.constant 0 : index
    %c0_5 = arith.constant 0 : index
    %2 = vector.load %arg3[%c0_4, %c0_5] : memref<32x32xf32, #tpu.memory_space<vmem>>, vector<32x32xf32>
    %c0_6 = arith.constant 0 : index
    %c0_7 = arith.constant 0 : index
    %3 = vector.load %arg4[%c0_6, %c0_7] : memref<1x32xf32, #tpu.memory_space<vmem>>, vector<1x32xf32>
    %c0_8 = arith.constant 0 : index
    %c0_9 = arith.constant 0 : index
    %4 = vector.load %arg5[%c0_8, %c0_9] : memref<1x32xf32, #tpu.memory_space<vmem>>, vector<1x32xf32>
    %c0_10 = arith.constant 0 : index
    %c0_11 = arith.constant 0 : index
    %5 = vector.load %arg6[%c0_10, %c0_11] : memref<1x1xf32, #tpu.memory_space<vmem>>, vector<1x1xf32>
    %cst = arith.constant dense<0.000000e+00> : vector<8x32xf32>
    %6 = tpu.matmul %1, %2, %cst {dimension_numbers = #tpu.dot_dimension_numbers<[1], [0], [0], [1], [0, 0, 1, 1], [], []>, precision = #tpu.contract_precision<fp32>} : vector<8x32xf32>, vector<32x32xf32>, vector<8x32xf32> -> vector<8x32xf32>
    %7 = vector.broadcast %3 : vector<1x32xf32> to vector<8x32xf32>
    %8 = arith.addf %6, %7 : vector<8x32xf32>
    %9 = vector.broadcast %4 : vector<1x32xf32> to vector<8x32xf32>
    %10 = arith.mulf %1, %9 : vector<8x32xf32>
    %cst_12 = arith.constant dense<0.000000e+00> : vector<8xf32>
    %11 = vector.multi_reduction <add>, %10, %cst_12 [1] : vector<8x32xf32> to vector<8xf32>
    %12 = vector.shape_cast %11 : vector<8xf32> to vector<8x1xf32>
    %13 = vector.broadcast %5 : vector<1x1xf32> to vector<8x1xf32>
    %14 = arith.addf %12, %13 : vector<8x1xf32>
    %15 = vector.shape_cast %8 : vector<8x32xf32> to vector<8x1x32xf32>
    %16 = vector.broadcast %15 : vector<8x1x32xf32> to vector<8x8x32xf32>
    %17 = arith.mulf %0, %16 : vector<8x8x32xf32>
    %cst_13 = arith.constant dense<0.000000e+00> : vector<8x8xf32>
    %18 = vector.multi_reduction <add>, %17, %cst_13 [2] : vector<8x8x32xf32> to vector<8x8xf32>
    %19 = vector.broadcast %14 : vector<8x1xf32> to vector<8x8xf32>
    %20 = arith.addf %18, %19 : vector<8x8xf32>
    %cst_14 = arith.constant 0.000000e+00 : f32
    %21 = vector.broadcast %cst_14 : f32 to vector<8x120xf32>
    %22 = tpu.concatenate %20, %21 in 1 : vector<8x8xf32>, vector<8x120xf32> -> vector<8x128xf32>
    %c0_15 = arith.constant 0 : index
    %c0_16 = arith.constant 0 : index
    %23 = vector.load %arg8[%c0_15, %c0_16] : memref<8x128xf32, #tpu.memory_space<vmem>>, vector<8x128xf32>
    tpu.vector_store %arg8[%c0_15, %c0_16], %22 {strides = array<i32>} : memref<8x128xf32, #tpu.memory_space<vmem>>, vector<8x128xf32>,
    %cst_17 = arith.constant dense<0xFF800000> : vector<8xf32>
    %24 = vector.multi_reduction <maximumf>, %20, %cst_17 [1] : vector<8x8xf32> to vector<8xf32>
    %25 = vector.shape_cast %24 : vector<8xf32> to vector<8x1xf32>
    %26 = vector.broadcast %25 : vector<8x1xf32> to vector<8x8xf32>
    %27 = arith.subf %20, %26 : vector<8x8xf32>
    %28 = math.exp %27 : vector<8x8xf32>
    %cst_18 = arith.constant dense<0.000000e+00> : vector<8xf32>
    %29 = vector.multi_reduction <add>, %28, %cst_18 [1] : vector<8x8xf32> to vector<8xf32>
    %30 = vector.shape_cast %29 : vector<8xf32> to vector<8x1xf32>
    %31 = vector.broadcast %30 : vector<8x1xf32> to vector<8x8xf32>
    %32 = arith.divf %28, %31 : vector<8x8xf32>
    %33 = vector.shape_cast %32 : vector<8x8xf32> to vector<8x8x1xf32>
    %34 = vector.broadcast %33 : vector<8x8x1xf32> to vector<8x8x32xf32>
    %35 = arith.mulf %34, %0 : vector<8x8x32xf32>
    %cst_19 = arith.constant dense<0.000000e+00> : vector<8x32xf32>
    %36 = vector.multi_reduction <add>, %35, %cst_19 [1] : vector<8x8x32xf32> to vector<8x32xf32>
    %c0_20 = arith.constant 0 : index
    %c0_21 = arith.constant 0 : index
    %37 = vector.load %arg7[%c0_20, %c0_21] : memref<8x32xf32, #tpu.memory_space<vmem>>, vector<8x32xf32>
    tpu.vector_store %arg7[%c0_20, %c0_21], %36 {strides = array<i32>} : memref<8x32xf32, #tpu.memory_space<vmem>>, vector<8x32xf32>,
    return
  }
  func.func @transform_0(%arg0: i32) -> (i32, i32) {
    %c0_i32 = arith.constant 0 : i32
    %c0_i32_0 = arith.constant 0 : i32
    return %arg0, %c0_i32 : i32, i32
  }
  func.func @transform_1(%arg0: i32) -> (i32, i32, i32) {
    %c0_i32 = arith.constant 0 : i32
    %c0_i32_0 = arith.constant 0 : i32
    %c0_i32_1 = arith.constant 0 : i32
    return %arg0, %c0_i32, %c0_i32_0 : i32, i32, i32
  }
  func.func @transform_2(%arg0: i32) -> (i32, i32) {
    %c0_i32 = arith.constant 0 : i32
    %c0_i32_0 = arith.constant 0 : i32
    %c0_i32_1 = arith.constant 0 : i32
    return %c0_i32, %c0_i32_0 : i32, i32
  }
  func.func @transform_3(%arg0: i32) -> (i32, i32) {
    %c0_i32 = arith.constant 0 : i32
    %c0_i32_0 = arith.constant 0 : i32
    %c0_i32_1 = arith.constant 0 : i32
    return %c0_i32, %c0_i32_0 : i32, i32
  }
  func.func @transform_4(%arg0: i32) -> (i32, i32) {
    %c0_i32 = arith.constant 0 : i32
    %c0_i32_0 = arith.constant 0 : i32
    %c0_i32_1 = arith.constant 0 : i32
    return %c0_i32, %c0_i32_0 : i32, i32
  }
  func.func @transform_5(%arg0: i32) -> (i32, i32) {
    %c0_i32 = arith.constant 0 : i32
    %c0_i32_0 = arith.constant 0 : i32
    %c0_i32_1 = arith.constant 0 : i32
    return %c0_i32, %c0_i32_0 : i32, i32
  }
  func.func @transform_6(%arg0: i32) -> (i32, i32) {
    %c0_i32 = arith.constant 0 : i32
    %c0_i32_0 = arith.constant 0 : i32
    return %arg0, %c0_i32 : i32, i32
  }
  func.func @transform_7(%arg0: i32) -> (i32, i32) {
    %c0_i32 = arith.constant 0 : i32
    %c0_i32_0 = arith.constant 0 : i32
    return %arg0, %c0_i32 : i32, i32
  }
}

</mosaic_0001>

<llo_original>
// kernel: tpu_custom_call.1
$region0: #{tpu_custom_call.1}
  #allocation0 [shape = 'u32[]', space=smem, size = 0x4, offset = 0x4, fixed_abs, tag = 'smem constant byte address 0x4 - core index']
  #allocation1 [shape = 'u32[144,128]{1,0:T(1,128)}', space=vmem, size = 0x12000, scoped, tag = 'internal scratch']
  #allocation2 [shape = 'f32[1,1]{1,0:T(1,128)S(1)}', space=vmem, size = 0x200, scoped, tag = 'scoped memory for tpu_custom_call.1']
  %s0 = inlined_call_operand.hbm [shape: f32[8,32], index: 0, kind: input, shape index: {}]
  %s1 = inlined_call_operand.hbm [shape: f32[8,8,32], index: 1, kind: input, shape index: {}]
  %s2 = inlined_call_operand.hbm [shape: f32[32,32], index: 2, kind: input, shape index: {}]
  %s3 = inlined_call_operand.vmem [shape: f32[1,32], index: 3, kind: input, shape index: {}]
  %s4 = inlined_call_operand.vmem [shape: f32[1,32], index: 4, kind: input, shape index: {}]
  %s5 = inlined_call_operand.<no memory space> [shape: f32[1,1], index: 5, kind: input, shape index: {}]
  %s6 = inlined_call_operand.hbm [shape: f32[8,32], index: 6, kind: output, shape index: {0}]
  %s7 = inlined_call_operand.hbm [shape: f32[8,128], index: 7, kind: output, shape index: {1}]
  %8 = xla_tuple %s6, %s7
  %s9 = sld [smem:[#allocation0]]
  $region54: #{tpu_custom_call.1} parent=0
    _
  %s11 = ssub.s32 1, %s9
  %s12 = scalar_select 0, %s11, %s9
  %v13 = vstv %s5
  %14 = vst [vmem:[#allocation2] sm:$0x1] %v13
  $region1: #{tpu_custom_call.1} parent=0
    #allocation3 [shape = 'u8[4096]{0}', space=vmem, size = 0x1000, scoped, tag = 'input window, operand 0, single buffered']
    #allocation4 [shape = 's32[1]{0}', space=sflag, size = 0x4, scoped, tag = 'scoped memory for tpu_custom_call.1']
    #allocation5 [shape = 's32[1]{0}', space=sflag, size = 0x4, scoped, tag = 'scoped memory for tpu_custom_call.1']
    #allocation6 [shape = 'u8[32768]{0}', space=vmem, size = 0x8000, scoped, tag = 'input window, operand 1, single buffered']
    #allocation7 [shape = 's32[1]{0}', space=sflag, size = 0x4, scoped, tag = 'scoped memory for tpu_custom_call.1']
    #allocation8 [shape = 'u8[16384]{0}', space=vmem, size = 0x4000, scoped, tag = 'input window, operand 2, single buffered']
    #allocation9 [shape = 'u8[4096]{0}', space=vmem, size = 0x1000, scoped, tag = 'output window, operand 0, single buffered']
    #allocation10 [shape = 'u8[4096]{0}', space=vmem, size = 0x1000, scoped, tag = 'output window, operand 1, single buffered']
    #allocation11 [shape = 's32[1]{0}', space=sflag, size = 0x4, scoped, tag = 'scoped memory for tpu_custom_call.1']
    %15 = vsyncpa [#allocation4], 0
    %16 = vsyncpa [#allocation7], 0
    %17 = vsyncpa [#allocation5], 0
    %18 = vsyncpa [#allocation11], 0
    // Predicated region
    $region2: #{tpu_custom_call.1} parent=1 // pred_check
      _
    $region3: #{tpu_custom_call.1} parent=1 // pred_check_branch
      %20 = sbr.rel (0) target = $region5
    $region4: #{tpu_custom_call.1} parent=1 // pred_region
      %s22 = ssub.s32 128, 128
      %23 = vsyncadd [#allocation4], %s22
      %s25 = sshll.u32 [#allocation3], 4
      %s26 = int_to_ptr.vmem [resolvable:$true] %s25
      %28 = dma.hbm_to_vmem [thread:$0]  %s0, 128, %s26, [#allocation4]
    $region5: #{tpu_custom_call.1} parent=1 // pred_fallthru
      _
    // Predicated region
    $region6: #{tpu_custom_call.1} parent=1 // pred_check
      _
    $region7: #{tpu_custom_call.1} parent=1 // pred_check_branch
      %30 = sbr.rel (0) target = $region9
    $region8: #{tpu_custom_call.1} parent=1 // pred_region
      %s32 = ssub.s32 1024, 1024
      %33 = vsyncadd [#allocation7], %s32
      %s34 = sshll.u32 [#allocation6], 4
      %s35 = int_to_ptr.vmem [resolvable:$true] %s34
      %40 = dma.hbm_to_vmem [thread:$0]  %s1, 1024, %s35, [#allocation7], 128, 128, 8
    $region9: #{tpu_custom_call.1} parent=1 // pred_fallthru
      _
    // Predicated region
    $region10: #{tpu_custom_call.1} parent=1 // pred_check
      _
    $region11: #{tpu_custom_call.1} parent=1 // pred_check_branch
      %42 = sbr.rel (0) target = $region13
    $region12: #{tpu_custom_call.1} parent=1 // pred_region
      %s44 = ssub.s32 512, 512
      %45 = vsyncadd [#allocation7], %s44
      %s46 = sshll.u32 [#allocation8], 4
      %s47 = int_to_ptr.vmem [resolvable:$true] %s46
      %52 = dma.hbm_to_vmem [thread:$0]  %s2, 512, %s47, [#allocation7], 128, 128, 8
    $region13: #{tpu_custom_call.1} parent=1 // pred_fallthru
      _
    // Predicated region
    $region14: #{tpu_custom_call.1} parent=1 // pred_check
      _
    $region15: #{tpu_custom_call.1} parent=1 // pred_check_branch
      %54 = sbr.rel (0) target = $region17
    $region16: #{tpu_custom_call.1} parent=1 // pred_region
      _
    $region17: #{tpu_custom_call.1} parent=1 // pred_fallthru
      _
    // Predicated region
    $region18: #{tpu_custom_call.1} parent=1 // pred_check
      _
    $region19: #{tpu_custom_call.1} parent=1 // pred_check_branch
      %56 = sbr.rel (0) target = $region21
    $region20: #{tpu_custom_call.1} parent=1 // pred_region
      _
    $region21: #{tpu_custom_call.1} parent=1 // pred_fallthru
      _
    // Predicated region
    $region22: #{tpu_custom_call.1} parent=1 // pred_check
      _
    $region23: #{tpu_custom_call.1} parent=1 // pred_check_branch
      %58 = sbr.rel (0) target = $region25
    $region24: #{tpu_custom_call.1} parent=1 // pred_region
      _
    $region25: #{tpu_custom_call.1} parent=1 // pred_fallthru
      _
    // Predicated region
    $region26: #{tpu_custom_call.1} parent=1 // pred_check
      _
    $region27: #{tpu_custom_call.1} parent=1 // pred_check_branch
      %60 = sbr.rel (0) target = $region29
    $region28: #{tpu_custom_call.1} parent=1 // pred_region
      %61 = dma.done [#allocation4], 128
    $region29: #{tpu_custom_call.1} parent=1 // pred_fallthru
      _
    // Predicated region
    $region30: #{tpu_custom_call.1} parent=1 // pred_check
      _
    $region31: #{tpu_custom_call.1} parent=1 // pred_check_branch
      %63 = sbr.rel (0) target = $region33
    $region32: #{tpu_custom_call.1} parent=1 // pred_region
      %64 = dma.done [#allocation7], 1024
    $region33: #{tpu_custom_call.1} parent=1 // pred_fallthru
      _
    // Predicated region
    $region34: #{tpu_custom_call.1} parent=1 // pred_check
      _
    $region35: #{tpu_custom_call.1} parent=1 // pred_check_branch
      %66 = sbr.rel (0) target = $region37
    $region36: #{tpu_custom_call.1} parent=1 // pred_region
      %67 = dma.done [#allocation7], 512
    $region37: #{tpu_custom_call.1} parent=1 // pred_fallthru
      _
    %v68 = vld [vmem:[#allocation6] sm:$0xff]
    %v69 = vld [vmem:[#allocation6 + $0x8] sm:$0xff]
    %v70 = vld [vmem:[#allocation6 + $0x10] sm:$0xff]
    %v71 = vld [vmem:[#allocation6 + $0x18] sm:$0xff]
    %v72 = vld [vmem:[#allocation6 + $0x20] sm:$0xff]
    %v73 = vld [vmem:[#allocation6 + $0x28] sm:$0xff]
    %v74 = vld [vmem:[#allocation6 + $0x30] sm:$0xff]
    %v75 = vld [vmem:[#allocation6 + $0x38] sm:$0xff]
    %v76 = vld [vmem:[#allocation3] sm:$0xff]
    %v77 = vld [vmem:[#allocation8] sm:$0xff]
    %v78 = vld [vmem:[#allocation8 + $0x8] sm:$0xff]
    %v79 = vld [vmem:[#allocation8 + $0x10] sm:$0xff]
    %v80 = vld [vmem:[#allocation8 + $0x18] sm:$0xff]
    %v81 = vld [vmem:[%s3] sm:$0x1]
    %v82 = vld [vmem:[%s4] sm:$0x1]
    %v83 = vld [vmem:[#allocation2] sm:$0x1]
    %v85 = vlaneseq
    %v86 = vshrl.u32 %v85, 7
    %v87 = vsub.s32 0, %v86
    %v88 = vrot.slane %v81, %v87
    %vm90 = vcmask 261120
    %v92 = vsel %vm90, %v76, 0
    %94 = vmatprep.subr.mxu0 0.0
    %v95 = vand.u32 %v77, 4294901760
    %96 = vmatpush1.msra.mxu0 %v95
    %97 = vmatprep.subr.mxu0 0.0
    %v98 = vand.u32 %v78, 4294901760
    %99 = vmatpush1.msra.mxu0 %v98
    %100 = vmatprep.subr.mxu0 0.0
    %v101 = vand.u32 %v79, 4294901760
    %102 = vmatpush1.msra.mxu0 %v101
    %103 = vmatprep.subr.mxu0 0.0
    %v104 = vand.u32 %v80, 4294901760
    %105 = vmatpush1.msra.mxu0 %v104
    %106 = vmatprep.subr.mxu0 0.0
    %107 = vmatpush1.msra.mxu0 0.0
    %108 = vmatprep.subr.mxu0 0.0
    %109 = vmatpush1.msra.mxu0 0.0
    %110 = vmatprep.subr.mxu0 0.0
    %111 = vmatpush1.msra.mxu0 0.0
    %112 = vmatprep.subr.mxu0 0.0
    %113 = vmatpush1.msra.mxu0 0.0
    %114 = vmatprep.subr.mxu0 0.0
    %115 = vmatpush1.msra.mxu0 0.0
    %116 = vmatprep.subr.mxu0 0.0
    %117 = vmatpush1.msra.mxu0 0.0
    %118 = vmatprep.subr.mxu0 0.0
    %119 = vmatpush1.msra.mxu0 0.0
    %120 = vmatprep.subr.mxu0 0.0
    %121 = vmatpush1.msra.mxu0 0.0
    %122 = vmatprep.subr.mxu0 0.0
    %123 = vmatpush1.msra.mxu0 0.0
    %124 = vmatprep.subr.mxu0 0.0
    %125 = vmatpush1.msra.mxu0 0.0
    %126 = vmatprep.subr.mxu0 0.0
    %127 = vmatpush1.msra.mxu0 0.0
    %128 = vmatprep.subr.mxu0 0.0
    %129 = vmatpush1.msra.mxu0 0.0
    %130 = vmatprep.subr.mxu0 0.0
    %131 = vmatpush1.msra.mxu0 0.0
    %132 = vmatprep.subr.mxu0 0.0
    %133 = vmatpush1.msra.mxu0 0.0
    %134 = vmatprep.subr.mxu0 0.0
    %135 = vmatpush1.msra.mxu0 0.0
    %136 = vmatprep.subr.mxu0 0.0
    %137 = vmatpush1.msra.mxu0 0.0
    %138 = vmatprep.subr.mxu0 0.0
    %139 = vmatpush1.msra.mxu0 0.0
    %140 = vmatprep.subr.mxu0 0.0
    %141 = vmatpush1.msra.mxu0 0.0
    %142 = vmatprep.subr.mxu0 0.0
    %143 = vmatpush1.msra.mxu0 0.0
    %144 = vmatprep.subr.mxu0 0.0
    %145 = vmatpush1.msra.mxu0 0.0
    %146 = vmatprep.subr.mxu0 0.0
    %147 = vmatpush1.msra.mxu0 0.0
    %148 = vmatprep.subr.mxu0 0.0
    %149 = vmatpush1.msra.mxu0 0.0
    %150 = vmatprep.subr.mxu0 0.0
    %151 = vmatpush1.msra.mxu0 0.0
    %152 = vmatprep.subr.mxu0 0.0
    %153 = vmatpush1.msra.mxu0 0.0
    %154 = vmatprep.subr.mxu0 0.0
    %155 = vmatpush1.msra.mxu0 0.0
    %156 = vmatprep.subr.mxu0 0.0
    %157 = vmatpush1.msra.mxu0 0.0
    %158 = vmatprep.subr.mxu0 0.0
    %159 = vmatpush1.msra.mxu0 0.0
    %160 = vmatprep.subr.mxu0 0.0
    %161 = vmatpush1.msra.mxu0 0.0
    %162 = vmatprep.mubr.f32.mxu0 0.0
    %v163 = vand.u32 %v92, 4294901760
    %v164 = vsub.f32 %v92, %v163
    %v165 = vand.u32 %v164, 4294901760
    %v166 = vsub.f32 %v164, %v165
    %v167 = vand.u32 %v166, 4294901760
    %168 = vmatmul.mubr.f32.gmra.mrb[0].mxu0 %v167
    %v169 = vpop.f32.mrb[0].mxu0
    %v170 = vadd.f32 %v88, %v169
    %v171 = vpop.f32.mrb[0].mxu0
    %172 = vdwg.mxu0
    %173 = vmatprep.subr.mxu0 0.0
    %v174 = vand.u32 %v77, 4294901760
    %v175 = vsub.f32 %v77, %v174
    %v176 = vand.u32 %v175, 4294901760
    %v177 = vsub.f32 %v175, %v176
    %v178 = vand.u32 %v177, 4294901760
    %179 = vmatpush1.msra.mxu0 %v178
    %180 = vmatprep.subr.mxu0 0.0
    %v181 = vand.u32 %v78, 4294901760
    %v182 = vsub.f32 %v78, %v181
    %v183 = vand.u32 %v182, 4294901760
    %v184 = vsub.f32 %v182, %v183
    %v185 = vand.u32 %v184, 4294901760
    %186 = vmatpush1.msra.mxu0 %v185
    %187 = vmatprep.subr.mxu0 0.0
    %v188 = vand.u32 %v79, 4294901760
    %v189 = vsub.f32 %v79, %v188
    %v190 = vand.u32 %v189, 4294901760
    %v191 = vsub.f32 %v189, %v190
    %v192 = vand.u32 %v191, 4294901760
    %193 = vmatpush1.msra.mxu0 %v192
    %194 = vmatprep.subr.mxu0 0.0
    %v195 = vand.u32 %v80, 4294901760
    %v196 = vsub.f32 %v80, %v195
    %v197 = vand.u32 %v196, 4294901760
    %v198 = vsub.f32 %v196, %v197
    %v199 = vand.u32 %v198, 4294901760
    %200 = vmatpush1.msra.mxu0 %v199
    %201 = vmatprep.subr.mxu0 0.0
    %202 = vmatpush1.msra.mxu0 0.0
    %203 = vmatprep.subr.mxu0 0.0
    %204 = vmatpush1.msra.mxu0 0.0
    %205 = vmatprep.subr.mxu0 0.0
    %206 = vmatpush1.msra.mxu0 0.0
    %207 = vmatprep.subr.mxu0 0.0
    %208 = vmatpush1.msra.mxu0 0.0
    %209 = vmatprep.subr.mxu0 0.0
    %210 = vmatpush1.msra.mxu0 0.0
    %211 = vmatprep.subr.mxu0 0.0
    %212 = vmatpush1.msra.mxu0 0.0
    %213 = vmatprep.subr.mxu0 0.0
    %214 = vmatpush1.msra.mxu0 0.0
    %215 = vmatprep.subr.mxu0 0.0
    %216 = vmatpush1.msra.mxu0 0.0
    %217 = vmatprep.subr.mxu0 0.0
    %218 = vmatpush1.msra.mxu0 0.0
    %219 = vmatprep.subr.mxu0 0.0
    %220 = vmatpush1.msra.mxu0 0.0
    %221 = vmatprep.subr.mxu0 0.0
    %222 = vmatpush1.msra.mxu0 0.0
    %223 = vmatprep.subr.mxu0 0.0
    %224 = vmatpush1.msra.mxu0 0.0
    %225 = vmatprep.subr.mxu0 0.0
    %226 = vmatpush1.msra.mxu0 0.0
    %227 = vmatprep.subr.mxu0 0.0
    %228 = vmatpush1.msra.mxu0 0.0
    %229 = vmatprep.subr.mxu0 0.0
    %230 = vmatpush1.msra.mxu0 0.0
    %231 = vmatprep.subr.mxu0 0.0
    %232 = vmatpush1.msra.mxu0 0.0
    %233 = vmatprep.subr.mxu0 0.0
    %234 = vmatpush1.msra.mxu0 0.0
    %235 = vmatprep.subr.mxu0 0.0
    %236 = vmatpush1.msra.mxu0 0.0
    %237 = vmatprep.subr.mxu0 0.0
    %238 = vmatpush1.msra.mxu0 0.0
    %239 = vmatprep.subr.mxu0 0.0
    %240 = vmatpush1.msra.mxu0 0.0
    %241 = vmatprep.subr.mxu0 0.0
    %242 = vmatpush1.msra.mxu0 0.0
    %243 = vmatprep.subr.mxu0 0.0
    %244 = vmatpush1.msra.mxu0 0.0
    %245 = vmatprep.subr.mxu0 0.0
    %246 = vmatpush1.msra.mxu0 0.0
    %247 = vmatprep.subr.mxu0 0.0
    %248 = vmatpush1.msra.mxu0 0.0
    %249 = vmatprep.subr.mxu0 0.0
    %250 = vmatpush1.msra.mxu0 0.0
    %251 = vmatprep.subr.mxu0 0.0
    %252 = vmatpush1.msra.mxu0 0.0
    %253 = vmatprep.subr.mxu0 0.0
    %254 = vmatpush1.msra.mxu0 0.0
    %255 = vmatprep.subr.mxu0 0.0
    %256 = vmatpush1.msra.mxu0 0.0
    %257 = vmatprep.mubr.f32.mxu0 0.0
    %v258 = vand.u32 %v92, 4294901760
    %259 = vmatmul.mubr.f32.gmra.mrb[0].mxu0 %v258
    %v260 = vpop.f32.mrb[0].mxu0
    %v261 = vadd.f32 %v170, %v260
    %v262 = vpop.f32.mrb[0].mxu0
    %263 = vdwg.mxu0
    %264 = vmatprep.subr.mxu0 0.0
    %v265 = vand.u32 %v77, 4294901760
    %v266 = vsub.f32 %v77, %v265
    %267 = vmatpush1.msra.mxu0 %v266
    %268 = vmatprep.subr.mxu0 0.0
    %v269 = vand.u32 %v78, 4294901760
    %v270 = vsub.f32 %v78, %v269
    %271 = vmatpush1.msra.mxu0 %v270
    %272 = vmatprep.subr.mxu0 0.0
    %v273 = vand.u32 %v79, 4294901760
    %v274 = vsub.f32 %v79, %v273
    %275 = vmatpush1.msra.mxu0 %v274
    %276 = vmatprep.subr.mxu0 0.0
    %v277 = vand.u32 %v80, 4294901760
    %v278 = vsub.f32 %v80, %v277
    %279 = vmatpush1.msra.mxu0 %v278
    %280 = vmatprep.subr.mxu0 0.0
    %281 = vmatpush1.msra.mxu0 0.0
    %282 = vmatprep.subr.mxu0 0.0
    %283 = vmatpush1.msra.mxu0 0.0
    %284 = vmatprep.subr.mxu0 0.0
    %285 = vmatpush1.msra.mxu0 0.0
    %286 = vmatprep.subr.mxu0 0.0
    %287 = vmatpush1.msra.mxu0 0.0
    %288 = vmatprep.subr.mxu0 0.0
    %289 = vmatpush1.msra.mxu0 0.0
    %290 = vmatprep.subr.mxu0 0.0
    %291 = vmatpush1.msra.mxu0 0.0
    %292 = vmatprep.subr.mxu0 0.0
    %293 = vmatpush1.msra.mxu0 0.0
    %294 = vmatprep.subr.mxu0 0.0
    %295 = vmatpush1.msra.mxu0 0.0
    %296 = vmatprep.subr.mxu0 0.0
    %297 = vmatpush1.msra.mxu0 0.0
    %298 = vmatprep.subr.mxu0 0.0
    %299 = vmatpush1.msra.mxu0 0.0
    %300 = vmatprep.subr.mxu0 0.0
    %301 = vmatpush1.msra.mxu0 0.0
    %302 = vmatprep.subr.mxu0 0.0
    %303 = vmatpush1.msra.mxu0 0.0
    %304 = vmatprep.subr.mxu0 0.0
    %305 = vmatpush1.msra.mxu0 0.0
    %306 = vmatprep.subr.mxu0 0.0
    %307 = vmatpush1.msra.mxu0 0.0
    %308 = vmatprep.subr.mxu0 0.0
    %309 = vmatpush1.msra.mxu0 0.0
    %310 = vmatprep.subr.mxu0 0.0
    %311 = vmatpush1.msra.mxu0 0.0
    %312 = vmatprep.subr.mxu0 0.0
    %313 = vmatpush1.msra.mxu0 0.0
    %314 = vmatprep.subr.mxu0 0.0
    %315 = vmatpush1.msra.mxu0 0.0
    %316 = vmatprep.subr.mxu0 0.0
    %317 = vmatpush1.msra.mxu0 0.0
    %318 = vmatprep.subr.mxu0 0.0
    %319 = vmatpush1.msra.mxu0 0.0
    %320 = vmatprep.subr.mxu0 0.0
    %321 = vmatpush1.msra.mxu0 0.0
    %322 = vmatprep.subr.mxu0 0.0
    %323 = vmatpush1.msra.mxu0 0.0
    %324 = vmatprep.subr.mxu0 0.0
    %325 = vmatpush1.msra.mxu0 0.0
    %326 = vmatprep.subr.mxu0 0.0
    %327 = vmatpush1.msra.mxu0 0.0
    %328 = vmatprep.subr.mxu0 0.0
    %329 = vmatpush1.msra.mxu0 0.0
    %330 = vmatprep.subr.mxu0 0.0
    %331 = vmatpush1.msra.mxu0 0.0
    %332 = vmatprep.subr.mxu0 0.0
    %333 = vmatpush1.msra.mxu0 0.0
    %334 = vmatprep.subr.mxu0 0.0
    %335 = vmatpush1.msra.mxu0 0.0
    %336 = vmatprep.mubr.f32.mxu0 0.0
    %v337 = vand.u32 %v92, 4294901760
    %v338 = vsub.f32 %v92, %v337
    %339 = vmatmul.mubr.f32.gmra.mrb[0].mxu0 %v338
    %v340 = vpop.f32.mrb[0].mxu0
    %v341 = vadd.f32 %v261, %v340
    %v342 = vpop.f32.mrb[0].mxu0
    %343 = vdwg.mxu0
    %344 = vmatprep.subr.mxu0 0.0
    %v345 = vand.u32 %v77, 4294901760
    %346 = vmatpush1.msra.mxu0 %v345
    %347 = vmatprep.subr.mxu0 0.0
    %v348 = vand.u32 %v78, 4294901760
    %349 = vmatpush1.msra.mxu0 %v348
    %350 = vmatprep.subr.mxu0 0.0
    %v351 = vand.u32 %v79, 4294901760
    %352 = vmatpush1.msra.mxu0 %v351
    %353 = vmatprep.subr.mxu0 0.0
    %v354 = vand.u32 %v80, 4294901760
    %355 = vmatpush1.msra.mxu0 %v354
    %356 = vmatprep.subr.mxu0 0.0
    %357 = vmatpush1.msra.mxu0 0.0
    %358 = vmatprep.subr.mxu0 0.0
    %359 = vmatpush1.msra.mxu0 0.0
    %360 = vmatprep.subr.mxu0 0.0
    %361 = vmatpush1.msra.mxu0 0.0
    %362 = vmatprep.subr.mxu0 0.0
    %363 = vmatpush1.msra.mxu0 0.0
    %364 = vmatprep.subr.mxu0 0.0
    %365 = vmatpush1.msra.mxu0 0.0
    %366 = vmatprep.subr.mxu0 0.0
    %367 = vmatpush1.msra.mxu0 0.0
    %368 = vmatprep.subr.mxu0 0.0
    %369 = vmatpush1.msra.mxu0 0.0
    %370 = vmatprep.subr.mxu0 0.0
    %371 = vmatpush1.msra.mxu0 0.0
    %372 = vmatprep.subr.mxu0 0.0
    %373 = vmatpush1.msra.mxu0 0.0
    %374 = vmatprep.subr.mxu0 0.0
    %375 = vmatpush1.msra.mxu0 0.0
    %376 = vmatprep.subr.mxu0 0.0
    %377 = vmatpush1.msra.mxu0 0.0
    %378 = vmatprep.subr.mxu0 0.0
    %379 = vmatpush1.msra.mxu0 0.0
    %380 = vmatprep.subr.mxu0 0.0
    %381 = vmatpush1.msra.mxu0 0.0
    %382 = vmatprep.subr.mxu0 0.0
    %383 = vmatpush1.msra.mxu0 0.0
    %384 = vmatprep.subr.mxu0 0.0
    %385 = vmatpush1.msra.mxu0 0.0
    %386 = vmatprep.subr.mxu0 0.0
    %387 = vmatpush1.msra.mxu0 0.0
    %388 = vmatprep.subr.mxu0 0.0
    %389 = vmatpush1.msra.mxu0 0.0
    %390 = vmatprep.subr.mxu0 0.0
    %391 = vmatpush1.msra.mxu0 0.0
    %392 = vmatprep.subr.mxu0 0.0
    %393 = vmatpush1.msra.mxu0 0.0
    %394 = vmatprep.subr.mxu0 0.0
    %395 = vmatpush1.msra.mxu0 0.0
    %396 = vmatprep.subr.mxu0 0.0
    %397 = vmatpush1.msra.mxu0 0.0
    %398 = vmatprep.subr.mxu0 0.0
    %399 = vmatpush1.msra.mxu0 0.0
    %400 = vmatprep.subr.mxu0 0.0
    %401 = vmatpush1.msra.mxu0 0.0
    %402 = vmatprep.subr.mxu0 0.0
    %403 = vmatpush1.msra.mxu0 0.0
    %404 = vmatprep.subr.mxu0 0.0
    %405 = vmatpush1.msra.mxu0 0.0
    %406 = vmatprep.subr.mxu0 0.0
    %407 = vmatpush1.msra.mxu0 0.0
    %408 = vmatprep.subr.mxu0 0.0
    %409 = vmatpush1.msra.mxu0 0.0
    %410 = vmatprep.subr.mxu0 0.0
    %411 = vmatpush1.msra.mxu0 0.0
    %412 = vmatprep.mubr.f32.mxu0 0.0
    %v413 = vand.u32 %v92, 4294901760
    %v414 = vsub.f32 %v92, %v413
    %v415 = vand.u32 %v414, 4294901760
    %416 = vmatmul.mubr.f32.gmra.mrb[0].mxu0 %v415
    %v417 = vpop.f32.mrb[0].mxu0
    %v418 = vadd.f32 %v341, %v417
    %v419 = vpop.f32.mrb[0].mxu0
    %420 = vdwg.mxu0
    %421 = vmatprep.subr.mxu0 0.0
    %v422 = vand.u32 %v77, 4294901760
    %v423 = vsub.f32 %v77, %v422
    %v424 = vand.u32 %v423, 4294901760
    %425 = vmatpush1.msra.mxu0 %v424
    %426 = vmatprep.subr.mxu0 0.0
    %v427 = vand.u32 %v78, 4294901760
    %v428 = vsub.f32 %v78, %v427
    %v429 = vand.u32 %v428, 4294901760
    %430 = vmatpush1.msra.mxu0 %v429
    %431 = vmatprep.subr.mxu0 0.0
    %v432 = vand.u32 %v79, 4294901760
    %v433 = vsub.f32 %v79, %v432
    %v434 = vand.u32 %v433, 4294901760
    %435 = vmatpush1.msra.mxu0 %v434
    %436 = vmatprep.subr.mxu0 0.0
    %v437 = vand.u32 %v80, 4294901760
    %v438 = vsub.f32 %v80, %v437
    %v439 = vand.u32 %v438, 4294901760
    %440 = vmatpush1.msra.mxu0 %v439
    %441 = vmatprep.subr.mxu0 0.0
    %442 = vmatpush1.msra.mxu0 0.0
    %443 = vmatprep.subr.mxu0 0.0
    %444 = vmatpush1.msra.mxu0 0.0
    %445 = vmatprep.subr.mxu0 0.0
    %446 = vmatpush1.msra.mxu0 0.0
    %447 = vmatprep.subr.mxu0 0.0
    %448 = vmatpush1.msra.mxu0 0.0
    %449 = vmatprep.subr.mxu0 0.0
    %450 = vmatpush1.msra.mxu0 0.0
    %451 = vmatprep.subr.mxu0 0.0
    %452 = vmatpush1.msra.mxu0 0.0
    %453 = vmatprep.subr.mxu0 0.0
    %454 = vmatpush1.msra.mxu0 0.0
    %455 = vmatprep.subr.mxu0 0.0
    %456 = vmatpush1.msra.mxu0 0.0
    %457 = vmatprep.subr.mxu0 0.0
    %458 = vmatpush1.msra.mxu0 0.0
    %459 = vmatprep.subr.mxu0 0.0
    %460 = vmatpush1.msra.mxu0 0.0
    %461 = vmatprep.subr.mxu0 0.0
    %462 = vmatpush1.msra.mxu0 0.0
    %463 = vmatprep.subr.mxu0 0.0
    %464 = vmatpush1.msra.mxu0 0.0
    %465 = vmatprep.subr.mxu0 0.0
    %466 = vmatpush1.msra.mxu0 0.0
    %467 = vmatprep.subr.mxu0 0.0
    %468 = vmatpush1.msra.mxu0 0.0
    %469 = vmatprep.subr.mxu0 0.0
    %470 = vmatpush1.msra.mxu0 0.0
    %471 = vmatprep.subr.mxu0 0.0
    %472 = vmatpush1.msra.mxu0 0.0
    %473 = vmatprep.subr.mxu0 0.0
    %474 = vmatpush1.msra.mxu0 0.0
    %475 = vmatprep.subr.mxu0 0.0
    %476 = vmatpush1.msra.mxu0 0.0
    %477 = vmatprep.subr.mxu0 0.0
    %478 = vmatpush1.msra.mxu0 0.0
    %479 = vmatprep.subr.mxu0 0.0
    %480 = vmatpush1.msra.mxu0 0.0
    %481 = vmatprep.subr.mxu0 0.0
    %482 = vmatpush1.msra.mxu0 0.0
    %483 = vmatprep.subr.mxu0 0.0
    %484 = vmatpush1.msra.mxu0 0.0
    %485 = vmatprep.subr.mxu0 0.0
    %486 = vmatpush1.msra.mxu0 0.0
    %487 = vmatprep.subr.mxu0 0.0
    %488 = vmatpush1.msra.mxu0 0.0
    %489 = vmatprep.subr.mxu0 0.0
    %490 = vmatpush1.msra.mxu0 0.0
    %491 = vmatprep.subr.mxu0 0.0
    %492 = vmatpush1.msra.mxu0 0.0
    %493 = vmatprep.subr.mxu0 0.0
    %494 = vmatpush1.msra.mxu0 0.0
    %495 = vmatprep.subr.mxu0 0.0
    %496 = vmatpush1.msra.mxu0 0.0
    %497 = vmatprep.mubr.f32.mxu0 0.0
    %v498 = vand.u32 %v92, 4294901760
    %499 = vmatmul.mubr.f32.gmra.mrb[0].mxu0 %v498
    %v500 = vpop.f32.mrb[0].mxu0
    %v501 = vadd.f32 %v418, %v500
    %v502 = vpop.f32.mrb[0].mxu0
    %503 = vdwg.mxu0
    %504 = vmatprep.subr.mxu0 0.0
    %v505 = vand.u32 %v77, 4294901760
    %506 = vmatpush1.msra.mxu0 %v505
    %507 = vmatprep.subr.mxu0 0.0
    %v508 = vand.u32 %v78, 4294901760
    %509 = vmatpush1.msra.mxu0 %v508
    %510 = vmatprep.subr.mxu0 0.0
    %v511 = vand.u32 %v79, 4294901760
    %512 = vmatpush1.msra.mxu0 %v511
    %513 = vmatprep.subr.mxu0 0.0
    %v514 = vand.u32 %v80, 4294901760
    %515 = vmatpush1.msra.mxu0 %v514
    %516 = vmatprep.subr.mxu0 0.0
    %517 = vmatpush1.msra.mxu0 0.0
    %518 = vmatprep.subr.mxu0 0.0
    %519 = vmatpush1.msra.mxu0 0.0
    %520 = vmatprep.subr.mxu0 0.0
    %521 = vmatpush1.msra.mxu0 0.0
    %522 = vmatprep.subr.mxu0 0.0
    %523 = vmatpush1.msra.mxu0 0.0
    %524 = vmatprep.subr.mxu0 0.0
    %525 = vmatpush1.msra.mxu0 0.0
    %526 = vmatprep.subr.mxu0 0.0
    %527 = vmatpush1.msra.mxu0 0.0
    %528 = vmatprep.subr.mxu0 0.0
    %529 = vmatpush1.msra.mxu0 0.0
    %530 = vmatprep.subr.mxu0 0.0
    %531 = vmatpush1.msra.mxu0 0.0
    %532 = vmatprep.subr.mxu0 0.0
    %533 = vmatpush1.msra.mxu0 0.0
    %534 = vmatprep.subr.mxu0 0.0
    %535 = vmatpush1.msra.mxu0 0.0
    %536 = vmatprep.subr.mxu0 0.0
    %537 = vmatpush1.msra.mxu0 0.0
    %538 = vmatprep.subr.mxu0 0.0
    %539 = vmatpush1.msra.mxu0 0.0
    %540 = vmatprep.subr.mxu0 0.0
    %541 = vmatpush1.msra.mxu0 0.0
    %542 = vmatprep.subr.mxu0 0.0
    %543 = vmatpush1.msra.mxu0 0.0
    %544 = vmatprep.subr.mxu0 0.0
    %545 = vmatpush1.msra.mxu0 0.0
    %546 = vmatprep.subr.mxu0 0.0
    %547 = vmatpush1.msra.mxu0 0.0
    %548 = vmatprep.subr.mxu0 0.0
    %549 = vmatpush1.msra.mxu0 0.0
    %550 = vmatprep.subr.mxu0 0.0
    %551 = vmatpush1.msra.mxu0 0.0
    %552 = vmatprep.subr.mxu0 0.0
    %553 = vmatpush1.msra.mxu0 0.0
    %554 = vmatprep.subr.mxu0 0.0
    %555 = vmatpush1.msra.mxu0 0.0
    %556 = vmatprep.subr.mxu0 0.0
    %557 = vmatpush1.msra.mxu0 0.0
    %558 = vmatprep.subr.mxu0 0.0
    %559 = vmatpush1.msra.mxu0 0.0
    %560 = vmatprep.subr.mxu0 0.0
    %561 = vmatpush1.msra.mxu0 0.0
    %562 = vmatprep.subr.mxu0 0.0
    %563 = vmatpush1.msra.mxu0 0.0
    %564 = vmatprep.subr.mxu0 0.0
    %565 = vmatpush1.msra.mxu0 0.0
    %566 = vmatprep.subr.mxu0 0.0
    %567 = vmatpush1.msra.mxu0 0.0
    %568 = vmatprep.subr.mxu0 0.0
    %569 = vmatpush1.msra.mxu0 0.0
    %570 = vmatprep.subr.mxu0 0.0
    %571 = vmatpush1.msra.mxu0 0.0
    %572 = vmatprep.mubr.f32.mxu0 0.0
    %v573 = vand.u32 %v92, 4294901760
    %574 = vmatmul.mubr.f32.gmra.mrb[0].mxu0 %v573
    %v575 = vpop.f32.mrb[0].mxu0
    %v576 = vadd.f32 %v501, %v575
    %v577 = vpop.f32.mrb[0].mxu0
    %578 = vdwg.mxu0
    %v580 = vlaneseq
    %v581 = vshrl.u32 %v580, 7
    %v582 = vsub.s32 0, %v581
    %v583 = vrot.slane %v82, %v582
    %v585 = vmul.f32 %v76, %v583
    %v586 = vsel %vm90, %v585, 0.0
    %587 = vadd.xlane.f32.xlu0 %v586
    %v588 = vpop.xlane.xlu0 %587
    %v590 = vlaneseq
    %v591 = vshrl.u32 %v590, 7
    %v592 = vsub.s32 0, %v591
    %v593 = vrot.slane %v83, %v592
    %v595 = vadd.f32 %v588, %v593
    %v597 = vcombine.high %v576, %v576
    %v599 = vunpack.c.l.s4 1966171168
    %v600 = vunpack.c.0.s8 %v599
    %v601 = vlaneseq
    %v602 = vshrl.u32 %v601, 7
    %v603 = vsub.s32 %v600, %v602
    %v604 = vrot.slane %v576, %v603
    %v606 = vunpack.c.l.s4 1966171168
    %v607 = vunpack.c.0.s8 %v606
    %v608 = vlaneseq
    %v609 = vshrl.u32 %v608, 7
    %v610 = vsub.s32 %v607, %v609
    %v611 = vrot.slane %v597, %v610
    %v612 = vcombine.high %v604, %v604
    %v613 = vcombine.high %v611, %v611
    %v615 = vunpack.c.l.s4 1966171168
    %v616 = vunpack.c.0.s8 %v615
    %v617 = vlaneseq
    %v618 = vshrl.u32 %v617, 7
    %v619 = vsub.s32 %v616, %v618
    %v620 = vrot.slane %v604, %v619
    %v622 = vunpack.c.l.s4 1966171168
    %v623 = vunpack.c.0.s8 %v622
    %v624 = vlaneseq
    %v625 = vshrl.u32 %v624, 7
    %v626 = vsub.s32 %v623, %v625
    %v627 = vrot.slane %v611, %v626
    %v629 = vunpack.c.l.s4 1966171168
    %v630 = vunpack.c.0.s8 %v629
    %v631 = vlaneseq
    %v632 = vshrl.u32 %v631, 7
    %v633 = vsub.s32 %v630, %v632
    %v634 = vrot.slane %v612, %v633
    %v636 = vunpack.c.l.s4 1966171168
    %v637 = vunpack.c.0.s8 %v636
    %v638 = vlaneseq
    %v639 = vshrl.u32 %v638, 7
    %v640 = vsub.s32 %v637, %v639
    %v641 = vrot.slane %v613, %v640
    %v642 = vcombine.high %v620, %v620
    %v643 = vcombine.high %v627, %v627
    %v644 = vcombine.high %v634, %v634
    %v645 = vcombine.high %v641, %v641
    %v646 = vlaneseq
    %v647 = vshrl.u32 %v646, 7
    %v648 = vsub.s32 0, %v647
    %v649 = vrot.slane %v620, %v648
    %v650 = vlaneseq
    %v651 = vshrl.u32 %v650, 7
    %v652 = vsub.s32 0, %v651
    %v653 = vrot.slane %v634, %v652
    %v654 = vlaneseq
    %v655 = vshrl.u32 %v654, 7
    %v656 = vsub.s32 0, %v655
    %v657 = vrot.slane %v642, %v656
    %v658 = vlaneseq
    %v659 = vshrl.u32 %v658, 7
    %v660 = vsub.s32 0, %v659
    %v661 = vrot.slane %v644, %v660
    %v662 = vlaneseq
    %v663 = vshrl.u32 %v662, 7
    %v664 = vsub.s32 0, %v663
    %v665 = vrot.slane %v627, %v664
    %v666 = vlaneseq
    %v667 = vshrl.u32 %v666, 7
    %v668 = vsub.s32 0, %v667
    %v669 = vrot.slane %v641, %v668
    %v670 = vlaneseq
    %v671 = vshrl.u32 %v670, 7
    %v672 = vsub.s32 0, %v671
    %v673 = vrot.slane %v643, %v672
    %v674 = vlaneseq
    %v675 = vshrl.u32 %v674, 7
    %v676 = vsub.s32 0, %v675
    %v677 = vrot.slane %v645, %v676
    %v686 = vmul.f32 %v68, %v649
    %v687 = vmul.f32 %v69, %v653
    %v688 = vmul.f32 %v70, %v657
    %v689 = vmul.f32 %v71, %v661
    %v690 = vmul.f32 %v72, %v665
    %v691 = vmul.f32 %v73, %v669
    %v692 = vmul.f32 %v74, %v673
    %v693 = vmul.f32 %v75, %v677
    %v694 = vsel %vm90, %v686, 0.0
    %695 = vadd.xlane.f32.xlu0 %v694
    %v696 = vpop.xlane.xlu0 %695
    %v697 = vsel %vm90, %v687, 0.0
    %698 = vadd.xlane.f32.xlu0 %v697
    %v699 = vpop.xlane.xlu0 %698
    %v700 = vsel %vm90, %v688, 0.0
    %701 = vadd.xlane.f32.xlu0 %v700
    %v702 = vpop.xlane.xlu0 %701
    %v703 = vsel %vm90, %v689, 0.0
    %704 = vadd.xlane.f32.xlu0 %v703
    %v705 = vpop.xlane.xlu0 %704
    %v706 = vsel %vm90, %v690, 0.0
    %707 = vadd.xlane.f32.xlu0 %v706
    %v708 = vpop.xlane.xlu0 %707
    %v709 = vsel %vm90, %v691, 0.0
    %710 = vadd.xlane.f32.xlu0 %v709
    %v711 = vpop.xlane.xlu0 %710
    %v712 = vsel %vm90, %v692, 0.0
    %713 = vadd.xlane.f32.xlu0 %v712
    %v714 = vpop.xlane.xlu0 %713
    %v715 = vsel %vm90, %v693, 0.0
    %716 = vadd.xlane.f32.xlu0 %v715
    %v717 = vpop.xlane.xlu0 %716
    %719 = vset.pattern.permute.xlu0 0
    %720 = vperm.xlu0 %719, %v595
    %v721 = vpop.permute.xlu0 %720
    %v722 = vlaneseq
    %v723 = vshrl.u32 %v722, 7
    %v724 = vsub.s32 0, %v723
    %v725 = vrot.slane %v721, %v724
    %v726 = vlaneseq
    %v727 = vshrl.u32 %v726, 7
    %v728 = vsub.s32 1, %v727
    %v729 = vrot.slane %v721, %v728
    %v730 = vlaneseq
    %v731 = vshrl.u32 %v730, 7
    %v732 = vsub.s32 2, %v731
    %v733 = vrot.slane %v721, %v732
    %v734 = vlaneseq
    %v735 = vshrl.u32 %v734, 7
    %v736 = vsub.s32 3, %v735
    %v737 = vrot.slane %v721, %v736
    %v738 = vlaneseq
    %v739 = vshrl.u32 %v738, 7
    %v740 = vsub.s32 4, %v739
    %v741 = vrot.slane %v721, %v740
    %v742 = vlaneseq
    %v743 = vshrl.u32 %v742, 7
    %v744 = vsub.s32 5, %v743
    %v745 = vrot.slane %v721, %v744
    %v746 = vlaneseq
    %v747 = vshrl.u32 %v746, 7
    %v748 = vsub.s32 6, %v747
    %v749 = vrot.slane %v721, %v748
    %v750 = vlaneseq
    %v751 = vshrl.u32 %v750, 7
    %v752 = vsub.s32 7, %v751
    %v753 = vrot.slane %v721, %v752
    %v762 = vadd.f32 %v696, %v725
    %v763 = vadd.f32 %v699, %v729
    %v764 = vadd.f32 %v702, %v733
    %v765 = vadd.f32 %v705, %v737
    %v766 = vadd.f32 %v708, %v741
    %v767 = vadd.f32 %v711, %v745
    %v768 = vadd.f32 %v714, %v749
    %v769 = vadd.f32 %v717, %v753
    %778 = vset.pattern.permute.xlu0 0
    %779 = vperm.xlu0 %778, %v762
    %v780 = vpop.permute.xlu0 %779
    %781 = vset.pattern.permute.xlu0 0
    %782 = vperm.xlu0 %781, %v763
    %v783 = vpop.permute.xlu0 %782
    %784 = vset.pattern.permute.xlu0 0
    %785 = vperm.xlu0 %784, %v764
    %v786 = vpop.permute.xlu0 %785
    %787 = vset.pattern.permute.xlu0 0
    %788 = vperm.xlu0 %787, %v765
    %v789 = vpop.permute.xlu0 %788
    %790 = vset.pattern.permute.xlu0 0
    %791 = vperm.xlu0 %790, %v766
    %v792 = vpop.permute.xlu0 %791
    %793 = vset.pattern.permute.xlu0 0
    %794 = vperm.xlu0 %793, %v767
    %v795 = vpop.permute.xlu0 %794
    %796 = vset.pattern.permute.xlu0 0
    %797 = vperm.xlu0 %796, %v768
    %v798 = vpop.permute.xlu0 %797
    %799 = vset.pattern.permute.xlu0 0
    %800 = vperm.xlu0 %799, %v769
    %v801 = vpop.permute.xlu0 %800
    %v802 = vlaneseq
    %v803 = vand.u32 %v802, 127
    %v804 = vlaneseq
    %v805 = vshrl.u32 %v804, 7
    %v806 = vsub.s32 %v803, %v805
    %v807 = vrot.slane %v780, %v806
    %v808 = vlaneseq
    %v809 = vshrl.u32 %v808, 7
    %v810 = vsub.s32 %v803, %v809
    %v811 = vrot.slane %v783, %v810
    %v812 = vlaneseq
    %v813 = vshrl.u32 %v812, 7
    %v814 = vsub.s32 %v803, %v813
    %v815 = vrot.slane %v786, %v814
    %v816 = vlaneseq
    %v817 = vshrl.u32 %v816, 7
    %v818 = vsub.s32 %v803, %v817
    %v819 = vrot.slane %v789, %v818
    %v820 = vlaneseq
    %v821 = vshrl.u32 %v820, 7
    %v822 = vsub.s32 %v803, %v821
    %v823 = vrot.slane %v792, %v822
    %v824 = vlaneseq
    %v825 = vshrl.u32 %v824, 7
    %v826 = vsub.s32 %v803, %v825
    %v827 = vrot.slane %v795, %v826
    %v828 = vlaneseq
    %v829 = vshrl.u32 %v828, 7
    %v830 = vsub.s32 %v803, %v829
    %v831 = vrot.slane %v798, %v830
    %v832 = vlaneseq
    %v833 = vshrl.u32 %v832, 7
    %v834 = vsub.s32 %v803, %v833
    %v835 = vrot.slane %v801, %v834
    %vm836 = vcmask 1041409
    %v837 = vsel %vm836, %v811, %v807
    %vm838 = vcmask 1042434
    %v839 = vsel %vm838, %v815, %v837
    %vm840 = vcmask 1043459
    %v841 = vsel %vm840, %v819, %v839
    %vm842 = vcmask 1044484
    %v843 = vsel %vm842, %v823, %v841
    %vm844 = vcmask 1045509
    %v845 = vsel %vm844, %v827, %v843
    %vm846 = vcmask 1046534
    %v847 = vsel %vm846, %v831, %v845
    %vm848 = vcmask 1047559
    %v849 = vsel %vm848, %v835, %v847
    %vm851 = vcmask 64512
    %v852 = vsel %vm851, %v849, 0.0
    %853 = vst [vmem:[#allocation10] sm:$0xff] %v852
    %v854 = vsel %vm851, %v849, -inf
    %855 = vmax.xlane.f32.xlu0 %v854
    %v856 = vpop.xlane.xlu0 %855
    %v858 = vlaneseq
    %v859 = vshrl.u32 %v858, 7
    %v860 = vsub.s32 0, %v859
    %v861 = vrot.slane %v856, %v860
    %v862 = vlaneseq
    %v863 = vshrl.u32 %v862, 7
    %v864 = vsub.s32 1, %v863
    %v865 = vrot.slane %v856, %v864
    %v866 = vlaneseq
    %v867 = vshrl.u32 %v866, 7
    %v868 = vsub.s32 2, %v867
    %v869 = vrot.slane %v856, %v868
    %v870 = vlaneseq
    %v871 = vshrl.u32 %v870, 7
    %v872 = vsub.s32 3, %v871
    %v873 = vrot.slane %v856, %v872
    %v874 = vlaneseq
    %v875 = vshrl.u32 %v874, 7
    %v876 = vsub.s32 4, %v875
    %v877 = vrot.slane %v856, %v876
    %v878 = vlaneseq
    %v879 = vshrl.u32 %v878, 7
    %v880 = vsub.s32 5, %v879
    %v881 = vrot.slane %v856, %v880
    %v882 = vlaneseq
    %v883 = vshrl.u32 %v882, 7
    %v884 = vsub.s32 6, %v883
    %v885 = vrot.slane %v856, %v884
    %v886 = vlaneseq
    %v887 = vshrl.u32 %v886, 7
    %v888 = vsub.s32 7, %v887
    %v889 = vrot.slane %v856, %v888
    %v898 = vsub.f32 %v762, %v861
    %v899 = vsub.f32 %v763, %v865
    %v900 = vsub.f32 %v764, %v869
    %v901 = vsub.f32 %v765, %v873
    %v902 = vsub.f32 %v766, %v877
    %v903 = vsub.f32 %v767, %v881
    %v904 = vsub.f32 %v768, %v885
    %v905 = vsub.f32 %v769, %v889
    %v906 = vmul.f32 %v898, 1.442695
    %v907 = vpow.pop %v906
    %v908 = vmul.f32 %v899, 1.442695
    %v909 = vpow.pop %v908
    %v910 = vmul.f32 %v900, 1.442695
    %v911 = vpow.pop %v910
    %v912 = vmul.f32 %v901, 1.442695
    %v913 = vpow.pop %v912
    %v914 = vmul.f32 %v902, 1.442695
    %v915 = vpow.pop %v914
    %v916 = vmul.f32 %v903, 1.442695
    %v917 = vpow.pop %v916
    %v918 = vmul.f32 %v904, 1.442695
    %v919 = vpow.pop %v918
    %v920 = vmul.f32 %v905, 1.442695
    %v921 = vpow.pop %v920
    %930 = vset.pattern.permute.xlu0 0
    %931 = vperm.xlu0 %930, %v907
    %v932 = vpop.permute.xlu0 %931
    %933 = vset.pattern.permute.xlu0 0
    %934 = vperm.xlu0 %933, %v909
    %v935 = vpop.permute.xlu0 %934
    %936 = vset.pattern.permute.xlu0 0
    %937 = vperm.xlu0 %936, %v911
    %v938 = vpop.permute.xlu0 %937
    %939 = vset.pattern.permute.xlu0 0
    %940 = vperm.xlu0 %939, %v913
    %v941 = vpop.permute.xlu0 %940
    %942 = vset.pattern.permute.xlu0 0
    %943 = vperm.xlu0 %942, %v915
    %v944 = vpop.permute.xlu0 %943
    %945 = vset.pattern.permute.xlu0 0
    %946 = vperm.xlu0 %945, %v917
    %v947 = vpop.permute.xlu0 %946
    %948 = vset.pattern.permute.xlu0 0
    %949 = vperm.xlu0 %948, %v919
    %v950 = vpop.permute.xlu0 %949
    %951 = vset.pattern.permute.xlu0 0
    %952 = vperm.xlu0 %951, %v921
    %v953 = vpop.permute.xlu0 %952
    %v954 = vlaneseq
    %v955 = vshrl.u32 %v954, 7
    %v956 = vsub.s32 %v803, %v955
    %v957 = vrot.slane %v932, %v956
    %v958 = vlaneseq
    %v959 = vshrl.u32 %v958, 7
    %v960 = vsub.s32 %v803, %v959
    %v961 = vrot.slane %v935, %v960
    %v962 = vlaneseq
    %v963 = vshrl.u32 %v962, 7
    %v964 = vsub.s32 %v803, %v963
    %v965 = vrot.slane %v938, %v964
    %v966 = vlaneseq
    %v967 = vshrl.u32 %v966, 7
    %v968 = vsub.s32 %v803, %v967
    %v969 = vrot.slane %v941, %v968
    %v970 = vlaneseq
    %v971 = vshrl.u32 %v970, 7
    %v972 = vsub.s32 %v803, %v971
    %v973 = vrot.slane %v944, %v972
    %v974 = vlaneseq
    %v975 = vshrl.u32 %v974, 7
    %v976 = vsub.s32 %v803, %v975
    %v977 = vrot.slane %v947, %v976
    %v978 = vlaneseq
    %v979 = vshrl.u32 %v978, 7
    %v980 = vsub.s32 %v803, %v979
    %v981 = vrot.slane %v950, %v980
    %v982 = vlaneseq
    %v983 = vshrl.u32 %v982, 7
    %v984 = vsub.s32 %v803, %v983
    %v985 = vrot.slane %v953, %v984
    %v986 = vsel %vm836, %v961, %v957
    %v987 = vsel %vm838, %v965, %v986
    %v988 = vsel %vm840, %v969, %v987
    %v989 = vsel %vm842, %v973, %v988
    %v990 = vsel %vm844, %v977, %v989
    %v991 = vsel %vm846, %v981, %v990
    %v992 = vsel %vm848, %v985, %v991
    %v994 = vsel %vm851, %v992, 0.0
    %995 = vadd.xlane.f32.xlu0 %v994
    %v996 = vpop.xlane.xlu0 %995
    %v998 = vlaneseq
    %v999 = vshrl.u32 %v998, 7
    %v1000 = vsub.s32 0, %v999
    %v1001 = vrot.slane %v996, %v1000
    %v1002 = vlaneseq
    %v1003 = vshrl.u32 %v1002, 7
    %v1004 = vsub.s32 1, %v1003
    %v1005 = vrot.slane %v996, %v1004
    %v1006 = vlaneseq
    %v1007 = vshrl.u32 %v1006, 7
    %v1008 = vsub.s32 2, %v1007
    %v1009 = vrot.slane %v996, %v1008
    %v1010 = vlaneseq
    %v1011 = vshrl.u32 %v1010, 7
    %v1012 = vsub.s32 3, %v1011
    %v1013 = vrot.slane %v996, %v1012
    %v1014 = vlaneseq
    %v1015 = vshrl.u32 %v1014, 7
    %v1016 = vsub.s32 4, %v1015
    %v1017 = vrot.slane %v996, %v1016
    %v1018 = vlaneseq
    %v1019 = vshrl.u32 %v1018, 7
    %v1020 = vsub.s32 5, %v1019
    %v1021 = vrot.slane %v996, %v1020
    %v1022 = vlaneseq
    %v1023 = vshrl.u32 %v1022, 7
    %v1024 = vsub.s32 6, %v1023
    %v1025 = vrot.slane %v996, %v1024
    %v1026 = vlaneseq
    %v1027 = vshrl.u32 %v1026, 7
    %v1028 = vsub.s32 7, %v1027
    %v1029 = vrot.slane %v996, %v1028
    %v1038 = vrcp.pop %v1001
    %v1039 = vmul.f32 %v907, %v1038
    %v1040 = vrcp.pop %v1005
    %v1041 = vmul.f32 %v909, %v1040
    %v1042 = vrcp.pop %v1009
    %v1043 = vmul.f32 %v911, %v1042
    %v1044 = vrcp.pop %v1013
    %v1045 = vmul.f32 %v913, %v1044
    %v1046 = vrcp.pop %v1017
    %v1047 = vmul.f32 %v915, %v1046
    %v1048 = vrcp.pop %v1021
    %v1049 = vmul.f32 %v917, %v1048
    %v1050 = vrcp.pop %v1025
    %v1051 = vmul.f32 %v919, %v1050
    %v1052 = vrcp.pop %v1029
    %v1053 = vmul.f32 %v921, %v1052
    %1055 = vset.pattern.permute.xlu0 0
    %1056 = vperm.xlu0 %1055, %v1039
    %v1057 = vpop.permute.xlu0 %1056
    %1060 = vset.pattern.permute.xlu0 0
    %1061 = vperm.xlu0 %1060, %v1041
    %v1062 = vpop.permute.xlu0 %1061
    %1065 = vset.pattern.permute.xlu0 0
    %1066 = vperm.xlu0 %1065, %v1043
    %v1067 = vpop.permute.xlu0 %1066
    %1070 = vset.pattern.permute.xlu0 0
    %1071 = vperm.xlu0 %1070, %v1045
    %v1072 = vpop.permute.xlu0 %1071
    %1075 = vset.pattern.permute.xlu0 0
    %1076 = vperm.xlu0 %1075, %v1047
    %v1077 = vpop.permute.xlu0 %1076
    %1080 = vset.pattern.permute.xlu0 0
    %1081 = vperm.xlu0 %1080, %v1049
    %v1082 = vpop.permute.xlu0 %1081
    %1085 = vset.pattern.permute.xlu0 0
    %1086 = vperm.xlu0 %1085, %v1051
    %v1087 = vpop.permute.xlu0 %1086
    %1090 = vset.pattern.permute.xlu0 0
    %1091 = vperm.xlu0 %1090, %v1053
    %v1092 = vpop.permute.xlu0 %1091
    %v1094 = vmul.f32 %v1057, %v68
    %v1095 = vmul.f32 %v1062, %v69
    %v1096 = vmul.f32 %v1067, %v70
    %v1097 = vmul.f32 %v1072, %v71
    %v1098 = vmul.f32 %v1077, %v72
    %v1099 = vmul.f32 %v1082, %v73
    %v1100 = vmul.f32 %v1087, %v74
    %v1101 = vmul.f32 %v1092, %v75
    %v1102 = vsel %vm90, %v1094, 0.0
    %v1103 = vrot.slane %v1102, 4
    %v1104 = vadd.f32 %v1102, %v1103
    %v1105 = vrot.slane %v1104, 2
    %v1106 = vadd.f32 %v1104, %v1105
    %v1107 = vrot.slane %v1106, 1
    %v1108 = vadd.f32 %v1106, %v1107
    %v1109 = vsel %vm90, %v1095, 0.0
    %v1110 = vrot.slane %v1109, 4
    %v1111 = vadd.f32 %v1109, %v1110
    %v1112 = vrot.slane %v1111, 2
    %v1113 = vadd.f32 %v1111, %v1112
    %v1114 = vrot.slane %v1113, 1
    %v1115 = vadd.f32 %v1113, %v1114
    %v1116 = vsel %vm90, %v1096, 0.0
    %v1117 = vrot.slane %v1116, 4
    %v1118 = vadd.f32 %v1116, %v1117
    %v1119 = vrot.slane %v1118, 2
    %v1120 = vadd.f32 %v1118, %v1119
    %v1121 = vrot.slane %v1120, 1
    %v1122 = vadd.f32 %v1120, %v1121
    %v1123 = vsel %vm90, %v1097, 0.0
    %v1124 = vrot.slane %v1123, 4
    %v1125 = vadd.f32 %v1123, %v1124
    %v1126 = vrot.slane %v1125, 2
    %v1127 = vadd.f32 %v1125, %v1126
    %v1128 = vrot.slane %v1127, 1
    %v1129 = vadd.f32 %v1127, %v1128
    %v1130 = vsel %vm90, %v1098, 0.0
    %v1131 = vrot.slane %v1130, 4
    %v1132 = vadd.f32 %v1130, %v1131
    %v1133 = vrot.slane %v1132, 2
    %v1134 = vadd.f32 %v1132, %v1133
    %v1135 = vrot.slane %v1134, 1
    %v1136 = vadd.f32 %v1134, %v1135
    %v1137 = vsel %vm90, %v1099, 0.0
    %v1138 = vrot.slane %v1137, 4
    %v1139 = vadd.f32 %v1137, %v1138
    %v1140 = vrot.slane %v1139, 2
    %v1141 = vadd.f32 %v1139, %v1140
    %v1142 = vrot.slane %v1141, 1
    %v1143 = vadd.f32 %v1141, %v1142
    %v1144 = vsel %vm90, %v1100, 0.0
    %v1145 = vrot.slane %v1144, 4
    %v1146 = vadd.f32 %v1144, %v1145
    %v1147 = vrot.slane %v1146, 2
    %v1148 = vadd.f32 %v1146, %v1147
    %v1149 = vrot.slane %v1148, 1
    %v1150 = vadd.f32 %v1148, %v1149
    %v1151 = vsel %vm90, %v1101, 0.0
    %v1152 = vrot.slane %v1151, 4
    %v1153 = vadd.f32 %v1151, %v1152
    %v1154 = vrot.slane %v1153, 2
    %v1155 = vadd.f32 %v1153, %v1154
    %v1156 = vrot.slane %v1155, 1
    %v1157 = vadd.f32 %v1155, %v1156
    %v1166 = vsel %vm836, %v1115, %v1108
    %v1167 = vsel %vm838, %v1122, %v1166
    %v1168 = vsel %vm840, %v1129, %v1167
    %v1169 = vsel %vm842, %v1136, %v1168
    %v1170 = vsel %vm844, %v1143, %v1169
    %v1171 = vsel %vm846, %v1150, %v1170
    %v1172 = vsel %vm848, %v1157, %v1171
    %1174 = vst.msk [vmem:[#allocation9] sm:$0xff] %vm90, %v1172
    // Predicated region
    $region38: #{tpu_custom_call.1} parent=1 // pred_check
      _
    $region39: #{tpu_custom_call.1} parent=1 // pred_check_branch
      %1176 = sbr.rel (0) target = $region41
    $region40: #{tpu_custom_call.1} parent=1 // pred_region
      %s1178 = ssub.s32 128, 128
      %1179 = vsyncadd [#allocation5], %s1178
      %s1181 = sshll.u32 [#allocation9], 4
      %s1182 = int_to_ptr.vmem [resolvable:$true] %s1181
      %1184 = dma.vmem_to_hbm [thread:$0]  %s1182, 128, %s6, [#allocation5]
    $region41: #{tpu_custom_call.1} parent=1 // pred_fallthru
      _
    // Predicated region
    $region42: #{tpu_custom_call.1} parent=1 // pred_check
      _
    $region43: #{tpu_custom_call.1} parent=1 // pred_check_branch
      %1186 = sbr.rel (0) target = $region45
    $region44: #{tpu_custom_call.1} parent=1 // pred_region
      %s1188 = ssub.s32 128, 128
      %1189 = vsyncadd [#allocation11], %s1188
      %s1191 = sshll.u32 [#allocation10], 4
      %s1192 = int_to_ptr.vmem [resolvable:$true] %s1191
      %1194 = dma.vmem_to_hbm [thread:$0]  %s1192, 128, %s7, [#allocation11]
    $region45: #{tpu_custom_call.1} parent=1 // pred_fallthru
      _
    // Predicated region
    $region46: #{tpu_custom_call.1} parent=1 // pred_check
      _
    $region47: #{tpu_custom_call.1} parent=1 // pred_check_branch
      %1196 = sbr.rel (0) target = $region49
    $region48: #{tpu_custom_call.1} parent=1 // pred_region
      %1197 = dma.done [#allocation5], 128
    $region49: #{tpu_custom_call.1} parent=1 // pred_fallthru
      _
    // Predicated region
    $region50: #{tpu_custom_call.1} parent=1 // pred_check
      _
    $region51: #{tpu_custom_call.1} parent=1 // pred_check_branch
      %1199 = sbr.rel (0) target = $region53
    $region52: #{tpu_custom_call.1} parent=1 // pred_region
      %1200 = dma.done [#allocation11], 128
    $region53: #{tpu_custom_call.1} parent=1 // pred_fallthru
      _
    %1201 = vsyncpa [#allocation4], 1
    %1202 = vsyncpa [#allocation7], 1
    %1203 = vsyncpa [#allocation5], 1
    %1204 = vsyncpa [#allocation11], 1

</llo_original>
